<compile_context>
chip_gen: v7x
topology: tpu7x:2x2x1
jax: 0.10.0
libtpu: 0.0.40
codegen_flags: <defaults>
</compile_context>

<pallas_src>
import functools

import jax
import jax.numpy as jnp
from jax.experimental import pallas as pl
from jax.experimental.pallas import tpu as pltpu


def _round_up(x: int, m: int) -> int:
    return ((x + m - 1) // m) * m


def softmax_body_kernel(x_ref, u_ref, tri_ref, a_ref, *, T: float):
    # x_ref: (TB, A) logits (native dtype), u_ref: (TB, 1) f32 uniforms,
    # tri_ref: (A, A) f32 upper-triangular ones (VMEM-resident), a_ref: (TB, 1) int32.
    x = x_ref[...].astype(jnp.float32) * T
    A = x.shape[-1]

    # Numerically stable softmax numerator; the denominator is folded into the
    # comparison threshold below, so no normalization / reciprocal is needed.
    m = jnp.max(x, axis=-1, keepdims=True)                    # (TB, 1)  XLU reduce
    e = jnp.exp(x - m)                                        # (TB, A)  EUP
    s = jnp.sum(e, axis=-1, keepdims=True)                    # (TB, 1)  XLU reduce

    # Threshold for inverse-CDF sampling on the UNnormalized CDF.
    thresh = u_ref[...].astype(jnp.float32) * s               # (TB, 1), broadcasts

    # Inclusive (unnormalized) CDF via one MXU matmul against the resident tri matrix:
    #   cdf[b, j] = sum_{k <= j} e[b, k]
    # TODO(synk): for A >~ 512, replace the O(A^2) tri matmul with a log2(A)-step
    # pltpu.roll prefix scan (the resident tri matrix alone would strain v7x VMEM).
    cdf = jnp.dot(e, tri_ref[...], preferred_element_type=jnp.float32)

    # action = #{j : cdf[b, j] < u[b] * s[b]}  (clamped to guard float ties at u ~ 1)
    idx = jnp.sum((cdf < thresh).astype(jnp.int32), axis=-1, keepdims=True)
    a_ref[...] = jnp.minimum(idx, A - 1)


def softmax_body(outputs: jax.Array, uniforms: jax.Array, T: float,
                 *, block_b: int = 1024) -> jax.Array:
    """outputs: (B, A) float logits (any float dtype, passed through un-cast);
    uniforms: (B, 1) in [0,1); returns (B, 1) int32 sampled actions."""
    B, A = outputs.shape
    in_bytes = max(jnp.dtype(outputs.dtype).itemsize, 1)

    # Batch tile: keep the double-buffered logits stream around ~4 MiB so the pipeline
    # fits comfortably under v5e's 16 MiB scoped default and v7x's 64 MiB VMEM.
    budget_rows = max(8, (4 * 1024 * 1024) // (2 * A * in_bytes))
    TB = min(block_b, budget_rows, _round_up(B, 8))
    TB = max(8, (TB // 8) * 8)
    Bp = _round_up(B, TB)

    if Bp != B:
        pad = Bp - B
        outputs = jnp.pad(outputs, ((0, pad), (0, 0)))
        uniforms = jnp.pad(uniforms, ((0, pad), (0, 0)), constant_values=0.5)

    uniforms = uniforms.astype(jnp.float32)
    tri = jnp.triu(jnp.ones((A, A), jnp.float32))             # tri[k, j] = 1 iff k <= j

    kernel = functools.partial(softmax_body_kernel, T=float(T))
    cost = pl.CostEstimate(
        flops=2 * Bp * A * A + 6 * Bp * A,                    # matmul CDF + VPU work
        transcendentals=Bp * A,                               # exp
        bytes_accessed=Bp * A * in_bytes + Bp * 4 + A * A * 4 + Bp * 4,
    )

    out = pl.pallas_call(
        kernel,
        out_shape=jax.ShapeDtypeStruct((Bp, 1), jnp.int32),
        grid=(Bp // TB,),
        in_specs=[
            pl.BlockSpec((TB, A), lambda i: (i, 0)),          # logits: streamed per tile
            pl.BlockSpec((TB, 1), lambda i: (i, 0)),          # uniforms: streamed per tile
            pl.BlockSpec((A, A), lambda i: (0, 0)),           # tri: DMA'd once, resident
        ],
        out_specs=pl.BlockSpec((TB, 1), lambda i: (i, 0)),
        compiler_params=pltpu.CompilerParams(
            dimension_semantics=("parallel",),                # megacore sharding on v7x
        ),
        cost_estimate=cost,
    )(outputs, uniforms, tri)
    return out[:B]


def softmax_body_ref(outputs, uniforms, T):
    """Pure-JAX reference (normalized cumsum formulation) for correctness checks."""
    probs = jax.nn.softmax(outputs.astype(jnp.float32) * T, axis=-1)
    cdf = jnp.cumsum(probs, axis=-1)
    idx = jnp.sum((cdf < uniforms.astype(jnp.float32)).astype(jnp.int32),
                  axis=-1, keepdims=True)
    return jnp.minimum(idx, outputs.shape[-1] - 1)


if __name__ == "__main__":
    key = jax.random.PRNGKey(0)
    k_logits, k_unif = jax.random.split(key)

    B, A = 16, 16          # 16 rows of Q-values, 16 actions
    T = 7.0                # temperature, as in typical SoftmaxBody usage

    outputs = jax.random.normal(k_logits, (B, A), dtype=jnp.float32)
    uniforms = jax.random.uniform(k_unif, (B, 1), dtype=jnp.float32)

    # block_b=8 -> TB=8, grid=(2,): exercises the tiled, pipelined path.
    actions = softmax_body(outputs, uniforms, T, block_b=8)
    actions = jax.block_until_ready(actions)
    assert actions.shape == (B, 1) and actions.dtype == jnp.int32

    ref = softmax_body_ref(outputs, uniforms, T)
    if not bool(jnp.all(actions == ref)):
        # The kernel sums the CDF in a different order than jnp.cumsum, so an exact
        # floating-point tie at a CDF boundary can shift the index by one. Only that
        # boundary case is accepted.
        probs = jax.nn.softmax(outputs * T, axis=-1)
        cdf = jnp.cumsum(probs, axis=-1)
        bad = jnp.nonzero(actions[:, 0] != ref[:, 0])[0]
        for r in bad.tolist():
            a_k, a_r = int(actions[r, 0]), int(ref[r, 0])
            assert abs(a_k - a_r) == 1, (r, a_k, a_r)
            assert abs(float(cdf[r, min(a_k, a_r)]) - float(uniforms[r, 0])) < 1e-5

    # Native-dtype path: bf16 logits go straight into the kernel (no wrapper upcast).
    actions_bf16 = jax.block_until_ready(
        softmax_body(outputs.astype(jnp.bfloat16), uniforms, T, block_b=8))
    assert actions_bf16.shape == (B, 1) and actions_bf16.dtype == jnp.int32
    assert bool(jnp.all((actions_bf16 >= 0) & (actions_bf16 < A)))

    print("KERNEL_OK")
</pallas_src>

<mosaic_0001>
module attributes {stable_mosaic.version = 11 : i64} {
  func.func @softmax_body_kernel(%arg0: i32, %arg1: memref<8x16xf32, #tpu.memory_space<vmem>>, %arg2: memref<8x1xf32, #tpu.memory_space<vmem>>, %arg3: memref<16x16xf32, #tpu.memory_space<vmem>>, %arg4: memref<8x1xi32, #tpu.memory_space<vmem>>) attributes {dimension_semantics = [#tpu.dimension_semantics<parallel>], iteration_bounds = array<i64: 2>, scalar_prefetch = 0 : i64, scratch_operands = 0 : i64, tpu.core_type = #tpu.core_type<tc>, window_params = [{transform_indices = @transform_0, window_bounds = array<i64: 8, 16>}, {transform_indices = @transform_1, window_bounds = array<i64: 8, 1>}, {pipeline_mode = #tpu.pipeline_mode<synchronous>, transform_indices = @transform_2, window_bounds = array<i64: 16, 16>}, {transform_indices = @transform_3, window_bounds = array<i64: 8, 1>}]} {
    %c0 = arith.constant 0 : index
    %c0_0 = arith.constant 0 : index
    %0 = vector.load %arg1[%c0, %c0_0] : memref<8x16xf32, #tpu.memory_space<vmem>>, vector<8x16xf32>
    %cst = arith.constant 7.000000e+00 : f32
    %1 = vector.broadcast %cst : f32 to vector<8x16xf32>
    %2 = arith.mulf %0, %1 : vector<8x16xf32>
    %cst_1 = arith.constant dense<0xFF800000> : vector<8xf32>
    %3 = vector.multi_reduction <maximumf>, %2, %cst_1 [1] : vector<8x16xf32> to vector<8xf32>
    %4 = vector.shape_cast %3 : vector<8xf32> to vector<8x1xf32>
    %5 = vector.broadcast %4 : vector<8x1xf32> to vector<8x16xf32>
    %6 = arith.subf %2, %5 : vector<8x16xf32>
    %7 = math.exp %6 : vector<8x16xf32>
    %cst_2 = arith.constant dense<0.000000e+00> : vector<8xf32>
    %8 = vector.multi_reduction <add>, %7, %cst_2 [1] : vector<8x16xf32> to vector<8xf32>
    %9 = vector.shape_cast %8 : vector<8xf32> to vector<8x1xf32>
    %c0_3 = arith.constant 0 : index
    %c0_4 = arith.constant 0 : index
    %10 = vector.load %arg2[%c0_3, %c0_4] : memref<8x1xf32, #tpu.memory_space<vmem>>, vector<8x1xf32>
    %11 = arith.mulf %10, %9 : vector<8x1xf32>
    %c0_5 = arith.constant 0 : index
    %c0_6 = arith.constant 0 : index
    %12 = vector.load %arg3[%c0_5, %c0_6] : memref<16x16xf32, #tpu.memory_space<vmem>>, vector<16x16xf32>
    %cst_7 = arith.constant dense<0.000000e+00> : vector<8x16xf32>
    %13 = tpu.matmul %7, %12, %cst_7 {dimension_numbers = #tpu.dot_dimension_numbers<[1], [0], [0], [1], [0, 0, 1, 1], [], []>} : vector<8x16xf32>, vector<16x16xf32>, vector<8x16xf32> -> vector<8x16xf32>
    %14 = vector.broadcast %11 : vector<8x1xf32> to vector<8x16xf32>
    %15 = arith.cmpf olt, %13, %14 : vector<8x16xf32>
    %16 = arith.extui %15 : vector<8x16xi1> to vector<8x16xi32>
    %cst_8 = arith.constant dense<0> : vector<8xi32>
    %17 = vector.multi_reduction <add>, %16, %cst_8 [1] : vector<8x16xi32> to vector<8xi32>
    %18 = vector.shape_cast %17 : vector<8xi32> to vector<8x1xi32>
    %c15_i32 = arith.constant 15 : i32
    %19 = vector.broadcast %c15_i32 : i32 to vector<8x1xi32>
    %20 = arith.minsi %18, %19 : vector<8x1xi32>
    %c0_9 = arith.constant 0 : index
    %c0_10 = arith.constant 0 : index
    %21 = vector.load %arg4[%c0_9, %c0_10] : memref<8x1xi32, #tpu.memory_space<vmem>>, vector<8x1xi32>
    tpu.vector_store %arg4[%c0_9, %c0_10], %20 {strides = array<i32>} : memref<8x1xi32, #tpu.memory_space<vmem>>, vector<8x1xi32>,
    return
  }
  func.func @transform_0(%arg0: i32) -> (i32, i32) {
    %c0_i32 = arith.constant 0 : i32
    %c0_i32_0 = arith.constant 0 : i32
    return %arg0, %c0_i32 : i32, i32
  }
  func.func @transform_1(%arg0: i32) -> (i32, i32) {
    %c0_i32 = arith.constant 0 : i32
    %c0_i32_0 = arith.constant 0 : i32
    return %arg0, %c0_i32 : i32, i32
  }
  func.func @transform_2(%arg0: i32) -> (i32, i32) {
    %c0_i32 = arith.constant 0 : i32
    %c0_i32_0 = arith.constant 0 : i32
    %c0_i32_1 = arith.constant 0 : i32
    return %c0_i32, %c0_i32_0 : i32, i32
  }
  func.func @transform_3(%arg0: i32) -> (i32, i32) {
    %c0_i32 = arith.constant 0 : i32
    %c0_i32_0 = arith.constant 0 : i32
    return %arg0, %c0_i32 : i32, i32
  }
}

</mosaic_0001>

<llo_original>
// kernel: tpu_custom_call.1
$region0: #{tpu_custom_call.1}
  #allocation0 [shape = 'u32[]', space=smem, size = 0x4, offset = 0x4, fixed_abs, tag = 'smem constant byte address 0x4 - core index']
  #allocation1 [shape = 'u32[144,128]{1,0:T(1,128)}', space=vmem, size = 0x12000, scoped, tag = 'internal scratch']
  %s0 = inlined_call_operand.vmem [shape: f32[16,16], index: 0, kind: input, shape index: {}]
  %s1 = inlined_call_operand.vmem [shape: f32[16,1], index: 1, kind: input, shape index: {}]
  %s2 = inlined_call_operand.hbm [shape: f32[16,16], index: 2, kind: input, shape index: {}]
  %s3 = inlined_call_operand.vmem [shape: s32[16,1], index: 3, kind: output, shape index: {}]
  %s4 = sld [smem:[#allocation0]]
  $region49: #{tpu_custom_call.1} parent=0
    _
  %s6 = ssub.s32 1, %s4
  %s7 = scalar_select 0, %s6, %s4
  $region1: #{tpu_custom_call.1} parent=0
    #allocation2 [shape = 'u8[8192]{0}', space=vmem, size = 0x2000, scoped, tag = 'input window, operand 2, single buffered']
    #allocation3 [shape = 's32[2]{0}', space=sflag, size = 0x8, scoped, tag = 'scoped memory for tpu_custom_call.1']
    %8 = vsyncpa [#allocation3], 0
    loop: start=0, step=1, limit=4
    $region2: #{tpu_custom_call.1} parent=1 // loop_pre_header
      _
    $region3: #{tpu_custom_call.1} parent=1 // loop_header
      %s10 = sphi 0, %s14
      %p11 = scmp.ge.s32.totalorder %s10, 4
      %s20 = sphi 0, %s22
      %s23 = sphi 0, %s20
      %s24 = sphi 0, %s23
      %s40 = sphi 0, %s24
      %s46 = sphi 0, %s48
      %s49 = sphi 0, %s46
      %s50 = sphi 0, %s49
      %s66 = sphi 0, %s50
      %s70 = sphi 0, %s70
      %s72 = sphi 0, %s70
      %s73 = sphi 0, %s72
      %s87 = sphi 0, %s73
      %s93 = sphi 0, %s95
      %s96 = sphi 0, %s93
      %s97 = sphi 0, %s96
      %s113 = sphi 0, %s97
    $region4: #{tpu_custom_call.1} parent=1 // loop_header_branch
      %13 = sbr.rel (%p11) target = $region8
    $region5: #{tpu_custom_call.1} parent=1 // loop_body
      %s15 = ssub.s32 %s10, 1
      %s16 = ssub.s32 %s10, 2
      %s17 = sadd.s32 %s10, 1
      %s18 = ssub.s32 %s10, %s17
      %p19 = scmp.eq.s32.totalorder %s18, 0
      %s21 = sadd.s32 %s20, 1
      %s22 = scalar_select %p19, %s20, %s21
      %p25 = pneg %p19
      %p26 = scmp.eq.s32.totalorder %s10, 1
      %p27 = por %p25, %p26
      %p28 = scmp.ne.s32.totalorder %s20, %s23
      %p29 = scmp.eq.s32.totalorder %s10, 0
      %p30 = por %p28, %p29
      %p31 = scmp.ne.s32.totalorder %s20, %s23
      %p32 = scmp.eq.s32.totalorder %s15, 1
      %p33 = por %p31, %p32
      %p34 = scmp.ne.s32.totalorder %s23, %s24
      %p35 = scmp.eq.s32.totalorder %s15, 0
      %p36 = por %p34, %p35
      %p37 = scmp.ne.s32.totalorder %s23, %s24
      %p38 = scmp.eq.s32.totalorder %s16, 1
      %p39 = por %p37, %p38
      %p41 = scmp.ne.s32.totalorder %s24, %s40
      %p42 = scmp.eq.s32.totalorder %s16, 0
      %p43 = por %p41, %p42
      %s44 = ssub.s32 %s10, %s17
      %p45 = scmp.eq.s32.totalorder %s44, 0
      %s47 = sadd.s32 %s46, 1
      %s48 = scalar_select %p45, %s46, %s47
      %p51 = pneg %p45
      %p52 = scmp.eq.s32.totalorder %s10, 1
      %p53 = por %p51, %p52
      %p54 = scmp.ne.s32.totalorder %s46, %s49
      %p55 = scmp.eq.s32.totalorder %s10, 0
      %p56 = por %p54, %p55
      %p57 = scmp.ne.s32.totalorder %s46, %s49
      %p58 = scmp.eq.s32.totalorder %s15, 1
      %p59 = por %p57, %p58
      %p60 = scmp.ne.s32.totalorder %s49, %s50
      %p61 = scmp.eq.s32.totalorder %s15, 0
      %p62 = por %p60, %p61
      %p63 = scmp.ne.s32.totalorder %s49, %s50
      %p64 = scmp.eq.s32.totalorder %s16, 1
      %p65 = por %p63, %p64
      %p67 = scmp.ne.s32.totalorder %s50, %s66
      %p68 = scmp.eq.s32.totalorder %s16, 0
      %p69 = por %p67, %p68
      %s71 = sadd.s32 %s70, 1
      %p74 = scmp.eq.s32.totalorder %s10, 1
      %p75 = scmp.ne.s32.totalorder %s70, %s72
      %p76 = scmp.eq.s32.totalorder %s10, 0
      %p77 = por %p75, %p76
      %p78 = scmp.ne.s32.totalorder %s70, %s72
      %p79 = scmp.eq.s32.totalorder %s15, 1
      %p80 = por %p78, %p79
      %p81 = scmp.ne.s32.totalorder %s72, %s73
      %p82 = scmp.eq.s32.totalorder %s15, 0
      %p83 = por %p81, %p82
      %p84 = scmp.ne.s32.totalorder %s72, %s73
      %p85 = scmp.eq.s32.totalorder %s16, 1
      %p86 = por %p84, %p85
      %p88 = scmp.ne.s32.totalorder %s73, %s87
      %p89 = scmp.eq.s32.totalorder %s16, 0
      %p90 = por %p88, %p89
      %s91 = ssub.s32 %s10, %s17
      %p92 = scmp.eq.s32.totalorder %s91, 0
      %s94 = sadd.s32 %s93, 1
      %s95 = scalar_select %p92, %s93, %s94
      %p98 = pneg %p92
      %p99 = scmp.eq.s32.totalorder %s10, 1
      %p100 = por %p98, %p99
      %p101 = scmp.ne.s32.totalorder %s93, %s96
      %p102 = scmp.eq.s32.totalorder %s10, 0
      %p103 = por %p101, %p102
      %p104 = scmp.ne.s32.totalorder %s93, %s96
      %p105 = scmp.eq.s32.totalorder %s15, 1
      %p106 = por %p104, %p105
      %p107 = scmp.ne.s32.totalorder %s96, %s97
      %p108 = scmp.eq.s32.totalorder %s15, 0
      %p109 = por %p107, %p108
      %p110 = scmp.ne.s32.totalorder %s96, %s97
      %p111 = scmp.eq.s32.totalorder %s16, 1
      %p112 = por %p110, %p111
      %p114 = scmp.ne.s32.totalorder %s97, %s113
      %p115 = scmp.eq.s32.totalorder %s16, 0
      %p116 = por %p114, %p115
      %p117 = scmp.le.s32.totalorder 1, %s10
      %p118 = scmp.lt.s32.totalorder %s10, 3
      %p119 = pnand %p117, %p118
      %p120 = pneg %p119
      // Predicated region
      $region9: #{tpu_custom_call.1} parent=5 // pred_check
        _
      $region10: #{tpu_custom_call.1} parent=5 // pred_check_branch
        %122 = sbr.rel (%p119) target = $region12
      $region11: #{tpu_custom_call.1} parent=5 // pred_region
        %s123 = ssub.s32 %s10, 1
        // Predicated region
        $region13: #{tpu_custom_call.1} parent=11 // pred_check
          %p124 = pneg %p83
        $region14: #{tpu_custom_call.1} parent=11 // pred_check_branch
          %126 = sbr.rel (%p124) target = $region16
        $region15: #{tpu_custom_call.1} parent=11 // pred_region
          %s128 = ssub.s32 256, 256
          %129 = vsyncadd [#allocation3], %s128
          %s130 = sshll.u32 [#allocation2], 4
          %s131 = int_to_ptr.vmem [resolvable:$true] %s130
          %136 = dma.hbm_to_vmem [thread:$0]  %s2, 256, %s131, [#allocation3], 128, 128, 8
        $region16: #{tpu_custom_call.1} parent=11 // pred_fallthru
          _
      $region12: #{tpu_custom_call.1} parent=5 // pred_fallthru
        _
      %p137 = scmp.lt.s32.totalorder %s10, 2
      // Predicated region
      $region17: #{tpu_custom_call.1} parent=5 // pred_check
        %p138 = pneg %p137
      $region18: #{tpu_custom_call.1} parent=5 // pred_check_branch
        %140 = sbr.rel (%p138) target = $region20
      $region19: #{tpu_custom_call.1} parent=5 // pred_region
        // Predicated region
        $region21: #{tpu_custom_call.1} parent=19 // pred_check
          %p141 = pneg %p30
        $region22: #{tpu_custom_call.1} parent=19 // pred_check_branch
          %143 = sbr.rel (%p141) target = $region24
        $region23: #{tpu_custom_call.1} parent=19 // pred_region
          %p144 = scmp.lt.s32.totalorder %s10, 1
          %s145 = scalar_select %p144, %s10, 1
          %s146 = smul.addr %s145, 8
          %s147 = scalar_lea.vmem %s0, %s146
        $region24: #{tpu_custom_call.1} parent=19 // pred_fallthru
          _
        // Predicated region
        $region25: #{tpu_custom_call.1} parent=19 // pred_check
          %p148 = pneg %p56
        $region26: #{tpu_custom_call.1} parent=19 // pred_check_branch
          %150 = sbr.rel (%p148) target = $region28
        $region27: #{tpu_custom_call.1} parent=19 // pred_region
          %p151 = scmp.lt.s32.totalorder %s10, 1
          %s152 = scalar_select %p151, %s10, 1
          %s153 = smul.addr %s152, 8
          %s154 = scalar_lea.vmem %s1, %s153
        $region28: #{tpu_custom_call.1} parent=19 // pred_fallthru
          _
      $region20: #{tpu_custom_call.1} parent=5 // pred_fallthru
        _
      %p155 = scmp.le.s32.totalorder 1, %s10
      %p156 = scmp.lt.s32.totalorder %s10, 3
      %p157 = pnand %p155, %p156
      %p158 = pneg %p157
      // Predicated region
      $region29: #{tpu_custom_call.1} parent=5 // pred_check
        _
      $region30: #{tpu_custom_call.1} parent=5 // pred_check_branch
        %160 = sbr.rel (%p157) target = $region32
      $region31: #{tpu_custom_call.1} parent=5 // pred_region
        %s161 = ssub.s32 %s10, 1
        // Predicated region
        $region33: #{tpu_custom_call.1} parent=31 // pred_check
          %p162 = pneg %p83
        $region34: #{tpu_custom_call.1} parent=31 // pred_check_branch
          %164 = sbr.rel (%p162) target = $region36
        $region35: #{tpu_custom_call.1} parent=31 // pred_region
          %165 = dma.done [#allocation3], 256
        $region36: #{tpu_custom_call.1} parent=31 // pred_fallthru
          _
        %p166 = scmp.lt.s32.totalorder %s15, 1
        %s167 = scalar_select %p166, %s15, 1
        %s168 = smul.addr %s167, 8
        %s169 = scalar_lea.vmem %s0, %s168
        %p170 = pneg %p36
        %p171 = pneg %p33
        %p172 = scmp.lt.s32.totalorder %s15, 1
        %s173 = scalar_select %p172, %s15, 1
        %s174 = smul.addr %s173, 8
        %s175 = scalar_lea.vmem %s1, %s174
        %p176 = pneg %p62
        %p177 = pneg %p59
        %p178 = pneg %p83
        %p179 = pneg %p80
        %p180 = pneg %p109
        %p181 = pneg %p106
        %p182 = scmp.lt.s32.totalorder %s15, 1
        %s183 = scalar_select %p182, %s15, 1
        %s184 = smul.addr %s183, 8
        %s185 = scalar_lea.vmem %s3, %s184
        %p186 = scmp.lt.s32.totalorder %s15, 1
        %s187 = scalar_select %p186, %s15, 1
        %s188 = smul.addr %s187, 8
        %s189 = scalar_lea.vmem %s0, %s188
        %p190 = scmp.lt.s32.totalorder %s15, 1
        %s191 = scalar_select %p190, %s15, 1
        %s192 = smul.addr %s191, 8
        %s193 = scalar_lea.vmem %s1, %s192
        %p194 = scmp.lt.s32.totalorder %s15, 1
        %s195 = scalar_select %p194, %s15, 1
        %s196 = smul.addr %s195, 8
        %s197 = scalar_lea.vmem %s3, %s196
        %v198 = vld [vmem:[%s189] sm:$0xff]
        %v199 = vmul.f32 %v198, 7.0
        %vm200 = vcmask 130048
        %v201 = vsel %vm200, %v199, -inf
        %202 = vmax.xlane.f32.xlu0 %v201
        %v203 = vpop.xlane.xlu0 %202
        %v204 = vsub.f32 %v199, %v203
        %v205 = vmul.f32 %v204, 1.442695
        %v206 = vpow.pop %v205
        %v207 = vsel %vm200, %v206, 0.0
        %208 = vadd.xlane.f32.xlu0 %v207
        %v209 = vpop.xlane.xlu0 %208
        %v210 = vld [vmem:[%s193] sm:$0xff]
        %v211 = vmul.f32 %v210, %v209
        %v212 = vld [vmem:[#allocation2] sm:$0xff]
        %v213 = vld [vmem:[#allocation2 + $0x8] sm:$0xff]
        %v215 = vsel %vm200, %v206, 0
        %217 = vmatprep.subr.mxu0 0.0
        %218 = vmatpush1.msra.mxu0 %v212
        %219 = vmatprep.subr.mxu0 0.0
        %220 = vmatpush1.msra.mxu0 %v213
        %221 = vmatprep.subr.mxu0 0.0
        %222 = vmatpush1.msra.mxu0 0.0
        %223 = vmatprep.subr.mxu0 0.0
        %224 = vmatpush1.msra.mxu0 0.0
        %225 = vmatprep.subr.mxu0 0.0
        %226 = vmatpush1.msra.mxu0 0.0
        %227 = vmatprep.subr.mxu0 0.0
        %228 = vmatpush1.msra.mxu0 0.0
        %229 = vmatprep.subr.mxu0 0.0
        %230 = vmatpush1.msra.mxu0 0.0
        %231 = vmatprep.subr.mxu0 0.0
        %232 = vmatpush1.msra.mxu0 0.0
        %233 = vmatprep.subr.mxu0 0.0
        %234 = vmatpush1.msra.mxu0 0.0
        %235 = vmatprep.subr.mxu0 0.0
        %236 = vmatpush1.msra.mxu0 0.0
        %237 = vmatprep.subr.mxu0 0.0
        %238 = vmatpush1.msra.mxu0 0.0
        %239 = vmatprep.subr.mxu0 0.0
        %240 = vmatpush1.msra.mxu0 0.0
        %241 = vmatprep.subr.mxu0 0.0
        %242 = vmatpush1.msra.mxu0 0.0
        %243 = vmatprep.subr.mxu0 0.0
        %244 = vmatpush1.msra.mxu0 0.0
        %245 = vmatprep.subr.mxu0 0.0
        %246 = vmatpush1.msra.mxu0 0.0
        %247 = vmatprep.subr.mxu0 0.0
        %248 = vmatpush1.msra.mxu0 0.0
        %249 = vmatprep.subr.mxu0 0.0
        %250 = vmatpush1.msra.mxu0 0.0
        %251 = vmatprep.subr.mxu0 0.0
        %252 = vmatpush1.msra.mxu0 0.0
        %253 = vmatprep.subr.mxu0 0.0
        %254 = vmatpush1.msra.mxu0 0.0
        %255 = vmatprep.subr.mxu0 0.0
        %256 = vmatpush1.msra.mxu0 0.0
        %257 = vmatprep.subr.mxu0 0.0
        %258 = vmatpush1.msra.mxu0 0.0
        %259 = vmatprep.subr.mxu0 0.0
        %260 = vmatpush1.msra.mxu0 0.0
        %261 = vmatprep.subr.mxu0 0.0
        %262 = vmatpush1.msra.mxu0 0.0
        %263 = vmatprep.subr.mxu0 0.0
        %264 = vmatpush1.msra.mxu0 0.0
        %265 = vmatprep.subr.mxu0 0.0
        %266 = vmatpush1.msra.mxu0 0.0
        %267 = vmatprep.subr.mxu0 0.0
        %268 = vmatpush1.msra.mxu0 0.0
        %269 = vmatprep.subr.mxu0 0.0
        %270 = vmatpush1.msra.mxu0 0.0
        %271 = vmatprep.subr.mxu0 0.0
        %272 = vmatpush1.msra.mxu0 0.0
        %273 = vmatprep.subr.mxu0 0.0
        %274 = vmatpush1.msra.mxu0 0.0
        %275 = vmatprep.subr.mxu0 0.0
        %276 = vmatpush1.msra.mxu0 0.0
        %277 = vmatprep.subr.mxu0 0.0
        %278 = vmatpush1.msra.mxu0 0.0
        %279 = vmatprep.subr.mxu0 0.0
        %280 = vmatpush1.msra.mxu0 0.0
        %281 = vmatprep.mubr.f32.mxu0 0.0
        %282 = vmatmul.mubr.f32.gmra.mrb[0].mxu0 %v215
        %v283 = vpop.f32.mrb[0].mxu0
        %v284 = vadd.f32 0.0, %v283
        %v285 = vpop.f32.mrb[0].mxu0
        %286 = vdwg.mxu0
        %288 = vset.pattern.permute.xlu0 0
        %289 = vperm.xlu0 %288, %v211
        %v290 = vpop.permute.xlu0 %289
        %vm292 = vcmp.lt.f32.partialorder %v284, %v290
        %v293 = vsel %vm292, 1, 0
        %v294 = vsel %vm200, %v293, 0
        %v295 = vand.u32 %v294, 65535
        %v296 = vshrl.u32 %v294, 16
        %v297 = vcvt.s32.f32 %v295
        %v298 = vcvt.s32.f32 %v296
        %299 = vadd.xlane.f32.xlu0 %v297
        %v300 = vpop.xlane.xlu0 %299
        %301 = vadd.xlane.f32.xlu0 %v298
        %v302 = vpop.xlane.xlu0 %301
        %v303 = vcvt.f32.s32 %v300
        %v304 = vcvt.f32.s32 %v302
        %v305 = vshll.u32 %v304, 16
        %v306 = vadd.s32 %v305, %v303
        %vm307 = vcmp.lt.s32.totalorder %v306, 15
        %v308 = vsel %vm307, %v306, 15
        %vm309 = vcmask 7168
        %310 = vst.msk [vmem:[%s197] sm:$0xff] %vm309, %v308
        %p311 = scmp.lt.s32.totalorder %s15, 1
        %s312 = scalar_select %p311, %s15, 1
        %s313 = smul.addr %s312, 8
        %s314 = scalar_lea.vmem %s3, %s313
        // Predicated region
        $region37: #{tpu_custom_call.1} parent=31 // pred_check
          %p315 = pneg %p106
        $region38: #{tpu_custom_call.1} parent=31 // pred_check_branch
          %317 = sbr.rel (%p315) target = $region40
        $region39: #{tpu_custom_call.1} parent=31 // pred_region
          _
        $region40: #{tpu_custom_call.1} parent=31 // pred_fallthru
          _
      $region32: #{tpu_custom_call.1} parent=5 // pred_fallthru
        _
      %p318 = scmp.le.s32.totalorder 2, %s10
      // Predicated region
      $region41: #{tpu_custom_call.1} parent=5 // pred_check
        %p319 = pneg %p318
      $region42: #{tpu_custom_call.1} parent=5 // pred_check_branch
        %321 = sbr.rel (%p319) target = $region44
      $region43: #{tpu_custom_call.1} parent=5 // pred_region
        %s322 = ssub.s32 %s10, 2
        // Predicated region
        $region45: #{tpu_custom_call.1} parent=43 // pred_check
          %p323 = pneg %p112
        $region46: #{tpu_custom_call.1} parent=43 // pred_check_branch
          %325 = sbr.rel (%p323) target = $region48
        $region47: #{tpu_custom_call.1} parent=43 // pred_region
          %p326 = scmp.lt.s32.totalorder %s16, 1
          %s327 = scalar_select %p326, %s16, 1
          %s328 = smul.addr %s327, 8
          %s329 = scalar_lea.vmem %s3, %s328
        $region48: #{tpu_custom_call.1} parent=43 // pred_fallthru
          _
      $region44: #{tpu_custom_call.1} parent=5 // pred_fallthru
        _
    $region6: #{tpu_custom_call.1} parent=1 // loop_footer
      %s14 = sadd.s32 1, %s10
    $region7: #{tpu_custom_call.1} parent=1 // loop_footer_branch
      %9 = sbr.rel target = $region3
    $region8: #{tpu_custom_call.1} parent=1 // loop_exit
      _
    %330 = vsyncpa [#allocation3], 1
    %s331 = scalar_lea.sflag [#allocation3], 1
    %332 = vsyncpa %s331, 1

</llo_original>
